<compile_context>
chip_gen: v5e
topology: v5e:2x2
jax: 0.10.0
libtpu: 0.0.40
codegen_flags: <defaults>
</compile_context>

<pallas_src>
import functools

import jax
import jax.numpy as jnp
from jax.experimental import pallas as pl
from jax.experimental.pallas import tpu as pltpu


def _round_up(n, m):
    return ((n + m - 1) // m) * m


def _vae_kernel(x_ref, eps_ref,
                w1_ref, b1_ref, w2_ref, b2_ref,
                wmv_ref, bmv_ref,
                wd1_ref, bd1_ref, wd2_ref, bd2_ref,
                wd3_ref, bd3_ref,
                out_ref, *, input_size, latent):
    # Compute dtype for MXU inputs (f32 or bf16); accumulation is always f32,
    # element-wise math (ReLU / exp / sigmoid) is always f32.
    cdt = w1_ref.dtype

    x = x_ref[...].astype(cdt)            # cast in-kernel (no wrapper HBM pass)
    eps = eps_ref[...].astype(jnp.float32)

    # ---- encoder -----------------------------------------------------------
    h1 = jnp.dot(x, w1_ref[...], preferred_element_type=jnp.float32) + b1_ref[...]
    h1 = jnp.maximum(h1, 0.0)                                   # F.relu
    h2 = jnp.dot(h1.astype(cdt), w2_ref[...],
                 preferred_element_type=jnp.float32) + b2_ref[...]
    h2 = jnp.maximum(h2, 0.0)                                   # F.relu

    # fc_mu | fc_var fused and placed directly at slab columns
    # [input_size, input_size + 2*latent) via the zero-padded wmv weights.
    mv_slab = jnp.dot(h2.astype(cdt), wmv_ref[...],
                      preferred_element_type=jnp.float32) + bmv_ref[...]
    mv = mv_slab[:, input_size:input_size + 2 * latent]
    mu = mv[:, :latent]
    log_var = mv[:, latent:]

    # ---- reparameterization ------------------------------------------------
    std = jnp.exp(0.5 * log_var)
    z = mu + std * eps

    # ---- decoder -----------------------------------------------------------
    d1 = jnp.dot(z.astype(cdt), wd1_ref[...],
                 preferred_element_type=jnp.float32) + bd1_ref[...]
    d1 = jnp.maximum(d1, 0.0)                                   # F.relu
    d2 = jnp.dot(d1.astype(cdt), wd2_ref[...],
                 preferred_element_type=jnp.float32) + bd2_ref[...]
    d2 = jnp.maximum(d2, 0.0)                                   # F.relu
    # wd3 is zero-padded to the full slab width, so d3_slab already has the
    # reconstruction in columns [0, input_size) and zeros after.
    d3_slab = jnp.dot(d2.astype(cdt), wd3_ref[...],
                      preferred_element_type=jnp.float32) + bd3_ref[...]

    # One lane-dense store: cols [0,196)=sigmoid(decode3), [196,228)=mu|log_var.
    col = jax.lax.broadcasted_iota(jnp.int32, d3_slab.shape, 1)
    slab = jnp.where(col < input_size, jax.nn.sigmoid(d3_slab), mv_slab)
    out_ref[...] = slab.astype(out_ref.dtype)


def vae_forward(x, eps, params, *, tile_b=2048, compute_dtype=jnp.float32):
    """Pallas-fused VAE forward.

    x:   any array reshapeable to (-1, input_size)   (mirrors x.view(-1, 196))
    eps: (batch, latent_size) standard-normal noise  (mirrors torch.randn_like)
    params: dict of pre-transposed (in, out) weights / (1, out) biases with the
            mu|var projection pre-fused as "wmv"/"bmv" (see init_params).
    compute_dtype: MXU input dtype (f32 or bf16; bf16 is supported on
            v5e/v6e/v7x — accumulation and element-wise math stay f32).
    Returns (reconstruction, mu, log_var), all float32.

    For best throughput wrap this function in jax.jit (the tiny weight-prep ops
    then fold away) and feed batches divisible by tile_b (avoids the only
    remaining wrapper-side copy pass).
    """
    input_size = params["w1"].shape[0]
    hidden1 = params["w1"].shape[1]
    hidden2 = params["w2"].shape[1]
    latent = params["wmv"].shape[1] // 2
    out_width = _round_up(input_size + 2 * latent, 128)   # lane-dense slab

    xf = x.reshape(-1, input_size)
    epsf = eps.reshape(-1, latent)
    B = xf.shape[0]

    cdt = jnp.dtype(compute_dtype)
    # bf16 packs 16 rows per sublane group -> round row tiles to 16 in bf16.
    row_align = 8 * (4 // cdt.itemsize)

    tile_b = min(int(tile_b), _round_up(B, row_align))
    tile_b = _round_up(max(tile_b, row_align), row_align)
    n_tiles = pl.cdiv(B, tile_b)
    Bp = n_tiles * tile_b
    if Bp != B:
        # Only when B % tile_b != 0: one copy pass over the ragged inputs.
        xf = jnp.pad(xf, ((0, Bp - B), (0, 0)))
        epsf = jnp.pad(epsf, ((0, Bp - B), (0, 0)))

    # ---- weight/bias operands (tiny arrays; folded/hoisted under jit) ------
    # wmv/bmv are placed at slab columns [input_size, input_size+2*latent);
    # wd3/bd3 are padded to the full slab width with zero columns.
    f32 = jnp.float32
    pad_mv = ((0, 0), (input_size, out_width - input_size - 2 * latent))
    pad_d3 = ((0, 0), (0, out_width - input_size))
    weight_operands = (
        params["w1"].astype(cdt), params["b1"].astype(f32),
        params["w2"].astype(cdt), params["b2"].astype(f32),
        jnp.pad(params["wmv"], pad_mv).astype(cdt),
        jnp.pad(params["bmv"], pad_mv).astype(f32),
        params["wd1"].astype(cdt), params["bd1"].astype(f32),
        params["wd2"].astype(cdt), params["bd2"].astype(f32),
        jnp.pad(params["wd3"], pad_d3).astype(cdt),
        jnp.pad(params["bd3"], pad_d3).astype(f32),
    )

    # BlockSpecs: batch-streamed arrays vs. VMEM-resident weights.
    row_spec = lambda width: pl.BlockSpec((tile_b, width), lambda i: (i, 0))
    weight_specs = [pl.BlockSpec(op.shape, lambda i: (0, 0))
                    for op in weight_operands]

    # Advisory cost estimate for the XLA scheduler.
    w_bytes = sum(int(op.size) * op.dtype.itemsize for op in weight_operands)
    flops = 2 * Bp * (input_size * hidden1 + hidden1 * hidden2
                      + hidden2 * out_width + latent * hidden2
                      + hidden2 * hidden1 + hidden1 * out_width)
    transcendentals = Bp * (latent + out_width)      # exp (reparam) + sigmoid
    bytes_accessed = (Bp * input_size * xf.dtype.itemsize     # x in
                      + Bp * latent * epsf.dtype.itemsize     # eps in
                      + Bp * out_width * 4                    # slab out
                      + w_bytes)                              # resident weights
    cost = pl.CostEstimate(flops=int(flops),
                           transcendentals=int(transcendentals),
                           bytes_accessed=int(bytes_accessed))

    out_slab = pl.pallas_call(
        functools.partial(_vae_kernel, input_size=input_size, latent=latent),
        out_shape=jax.ShapeDtypeStruct((Bp, out_width), jnp.float32),
        grid_spec=pltpu.PrefetchScalarGridSpec(
            num_scalar_prefetch=0,
            grid=(n_tiles,),
            in_specs=[row_spec(input_size),           # x tiles
                      row_spec(latent)]               # eps tiles
                     + weight_specs,                  # resident weights/biases
            out_specs=row_spec(out_width),            # recon|mu|log_var slab
        ),
        compiler_params=pltpu.CompilerParams(
            dimension_semantics=("parallel",),        # megacore on v7x
            vmem_limit_bytes=48 * 1024 * 1024),       # headroom for tile_b~4096
        cost_estimate=cost,
    )(xf, epsf, *weight_operands)

    recon = out_slab[:B, :input_size]
    mu = out_slab[:B, input_size:input_size + latent]
    log_var = out_slab[:B, input_size + latent:input_size + 2 * latent]
    return recon, mu, log_var


def init_params(key, input_size, hidden1, hidden2, latent):
    """Deterministic init mimicking nn.Linear default (U[-1/sqrt(fan_in), ...]).
    Weights stored pre-transposed as (in, out); biases as (1, out).
    fc_mu / fc_var are packed into a single fused "wmv"/"bmv" (mu cols first)."""
    def linear(k, fan_in, fan_out):
        kw, kb = jax.random.split(k)
        bound = 1.0 / jnp.sqrt(fan_in)
        w = jax.random.uniform(kw, (fan_in, fan_out), jnp.float32, -bound, bound)
        b = jax.random.uniform(kb, (1, fan_out), jnp.float32, -bound, bound)
        return w, b

    keys = jax.random.split(key, 7)
    p = {}
    p["w1"], p["b1"] = linear(keys[0], input_size, hidden1)       # encode1
    p["w2"], p["b2"] = linear(keys[1], hidden1, hidden2)          # encode2
    wmu, bmu = linear(keys[2], hidden2, latent)                   # fc_mu
    wvar, bvar = linear(keys[3], hidden2, latent)                 # fc_var
    p["wmv"] = jnp.concatenate([wmu, wvar], axis=1)               # fused mu|var
    p["bmv"] = jnp.concatenate([bmu, bvar], axis=1)
    p["wd1"], p["bd1"] = linear(keys[4], latent, hidden2)         # decode1
    p["wd2"], p["bd2"] = linear(keys[5], hidden2, hidden1)        # decode2
    p["wd3"], p["bd3"] = linear(keys[6], hidden1, input_size)     # decode3
    return p


def _ref_forward(x, eps, params):
    """Pure-JAX reference of the PyTorch forward for sanity checking."""
    input_size = params["w1"].shape[0]
    latent = params["wmv"].shape[1] // 2
    xf = x.reshape(-1, input_size).astype(jnp.float32)
    h = jax.nn.relu(xf @ params["w1"] + params["b1"])
    h = jax.nn.relu(h @ params["w2"] + params["b2"])
    mv = h @ params["wmv"] + params["bmv"]
    mu, log_var = mv[:, :latent], mv[:, latent:]
    z = mu + jnp.exp(0.5 * log_var) * eps
    d = jax.nn.relu(z @ params["wd1"] + params["bd1"])
    d = jax.nn.relu(d @ params["wd2"] + params["bd2"])
    recon = jax.nn.sigmoid(d @ params["wd3"] + params["bd3"])
    return recon, mu, log_var


if __name__ == "__main__":
    # Module hard-codes x.view(-1, 196)  =>  input_size = 196 (e.g. 14x14 images)
    INPUT_SIZE, HIDDEN1, HIDDEN2, LATENT = 196, 64, 32, 16
    BATCH = 2

    key = jax.random.PRNGKey(0)
    k_x, k_eps, k_p, k_x2, k_eps2 = jax.random.split(key, 5)

    # NCHW input, flattened to (-1, 196) inside the wrapper (like x.view(-1, 196))
    x = jax.random.normal(k_x, (BATCH, 1, 14, 14), jnp.float32)
    eps = jax.random.normal(k_eps, (BATCH, LATENT), jnp.float32)
    params = init_params(k_p, INPUT_SIZE, HIDDEN1, HIDDEN2, LATENT)

    fwd = jax.jit(vae_forward, static_argnames=("tile_b", "compute_dtype"))

    # --- small-batch run (single tile) --------------------------------------
    recon, mu, log_var = jax.block_until_ready(fwd(x, eps, params))
    r_ref, mu_ref, lv_ref = _ref_forward(x, eps, params)
    assert recon.shape == (BATCH, INPUT_SIZE)
    assert mu.shape == (BATCH, LATENT) and log_var.shape == (BATCH, LATENT)
    assert jnp.allclose(recon, r_ref, atol=1e-5)
    assert jnp.allclose(mu, mu_ref, atol=1e-5)
    assert jnp.allclose(log_var, lv_ref, atol=1e-5)

    # --- multi-tile grid path (batch not a multiple of the tile) ------------
    B2 = 600
    x2 = jax.random.normal(k_x2, (B2, INPUT_SIZE), jnp.float32)
    eps2 = jax.random.normal(k_eps2, (B2, LATENT), jnp.float32)
    r2, mu2, lv2 = jax.block_until_ready(fwd(x2, eps2, params, tile_b=256))
    r2_ref, mu2_ref, lv2_ref = _ref_forward(x2, eps2, params)
    assert jnp.allclose(r2, r2_ref, atol=1e-4)
    assert jnp.allclose(mu2, mu2_ref, atol=1e-4)
    assert jnp.allclose(lv2, lv2_ref, atol=1e-4)

    # --- bf16 MXU-input path (v5e/v6e/v7x), f32 accumulation -----------------
    r3, mu3, lv3 = jax.block_until_ready(
        fwd(x2, eps2, params, tile_b=256, compute_dtype=jnp.bfloat16))
    assert jnp.max(jnp.abs(r3 - r2_ref)) < 0.2
    assert jnp.max(jnp.abs(mu3 - mu2_ref)) < 0.2
    assert jnp.max(jnp.abs(lv3 - lv2_ref)) < 0.2

    print("KERNEL_OK")
</pallas_src>

<mosaic_0001>
module attributes {stable_mosaic.version = 11 : i64} {
  func.func @_vae_kernel(%arg0: i32, %arg1: memref<8x196xf32, #tpu.memory_space<vmem>>, %arg2: memref<8x16xf32, #tpu.memory_space<vmem>>, %arg3: memref<196x64xf32, #tpu.memory_space<vmem>>, %arg4: memref<1x64xf32, #tpu.memory_space<vmem>>, %arg5: memref<64x32xf32, #tpu.memory_space<vmem>>, %arg6: memref<1x32xf32, #tpu.memory_space<vmem>>, %arg7: memref<32x256xf32, #tpu.memory_space<vmem>>, %arg8: memref<1x256xf32, #tpu.memory_space<vmem>>, %arg9: memref<16x32xf32, #tpu.memory_space<vmem>>, %arg10: memref<1x32xf32, #tpu.memory_space<vmem>>, %arg11: memref<32x64xf32, #tpu.memory_space<vmem>>, %arg12: memref<1x64xf32, #tpu.memory_space<vmem>>, %arg13: memref<64x256xf32, #tpu.memory_space<vmem>>, %arg14: memref<1x256xf32, #tpu.memory_space<vmem>>, %arg15: memref<8x256xf32, #tpu.memory_space<vmem>>) attributes {dimension_semantics = [#tpu.dimension_semantics<parallel>], iteration_bounds = array<i64: 1>, scalar_prefetch = 0 : i64, scratch_operands = 0 : i64, tpu.core_type = #tpu.core_type<tc>, window_params = [{transform_indices = @transform_0, window_bounds = array<i64: 8, 196>}, {transform_indices = @transform_1, window_bounds = array<i64: 8, 16>}, {pipeline_mode = #tpu.pipeline_mode<synchronous>, transform_indices = @transform_2, window_bounds = array<i64: 196, 64>}, {pipeline_mode = #tpu.pipeline_mode<synchronous>, transform_indices = @transform_3, window_bounds = array<i64: 1, 64>}, {pipeline_mode = #tpu.pipeline_mode<synchronous>, transform_indices = @transform_4, window_bounds = array<i64: 64, 32>}, {pipeline_mode = #tpu.pipeline_mode<synchronous>, transform_indices = @transform_5, window_bounds = array<i64: 1, 32>}, {pipeline_mode = #tpu.pipeline_mode<synchronous>, transform_indices = @transform_6, window_bounds = array<i64: 32, 256>}, {pipeline_mode = #tpu.pipeline_mode<synchronous>, transform_indices = @transform_7, window_bounds = array<i64: 1, 256>}, {pipeline_mode = #tpu.pipeline_mode<synchronous>, transform_indices = @transform_8, window_bounds = array<i64: 16, 32>}, {pipeline_mode = #tpu.pipeline_mode<synchronous>, transform_indices = @transform_9, window_bounds = array<i64: 1, 32>}, {pipeline_mode = #tpu.pipeline_mode<synchronous>, transform_indices = @transform_10, window_bounds = array<i64: 32, 64>}, {pipeline_mode = #tpu.pipeline_mode<synchronous>, transform_indices = @transform_11, window_bounds = array<i64: 1, 64>}, {pipeline_mode = #tpu.pipeline_mode<synchronous>, transform_indices = @transform_12, window_bounds = array<i64: 64, 256>}, {pipeline_mode = #tpu.pipeline_mode<synchronous>, transform_indices = @transform_13, window_bounds = array<i64: 1, 256>}, {transform_indices = @transform_14, window_bounds = array<i64: 8, 256>}]} {
    %c0 = arith.constant 0 : index
    %c0_0 = arith.constant 0 : index
    %0 = vector.load %arg1[%c0, %c0_0] : memref<8x196xf32, #tpu.memory_space<vmem>>, vector<8x196xf32>
    %c0_1 = arith.constant 0 : index
    %c0_2 = arith.constant 0 : index
    %1 = vector.load %arg2[%c0_1, %c0_2] : memref<8x16xf32, #tpu.memory_space<vmem>>, vector<8x16xf32>
    %c0_3 = arith.constant 0 : index
    %c0_4 = arith.constant 0 : index
    %2 = vector.load %arg3[%c0_3, %c0_4] : memref<196x64xf32, #tpu.memory_space<vmem>>, vector<196x64xf32>
    %cst = arith.constant dense<0.000000e+00> : vector<8x64xf32>
    %3 = tpu.matmul %0, %2, %cst {dimension_numbers = #tpu.dot_dimension_numbers<[1], [0], [0], [1], [0, 0, 1, 1], [], []>} : vector<8x196xf32>, vector<196x64xf32>, vector<8x64xf32> -> vector<8x64xf32>
    %c0_5 = arith.constant 0 : index
    %c0_6 = arith.constant 0 : index
    %4 = vector.load %arg4[%c0_5, %c0_6] : memref<1x64xf32, #tpu.memory_space<vmem>>, vector<1x64xf32>
    %5 = vector.broadcast %4 : vector<1x64xf32> to vector<8x64xf32>
    %6 = arith.addf %3, %5 : vector<8x64xf32>
    %cst_7 = arith.constant 0.000000e+00 : f32
    %7 = vector.broadcast %cst_7 : f32 to vector<8x64xf32>
    %8 = arith.maximumf %6, %7 : vector<8x64xf32>
    %c0_8 = arith.constant 0 : index
    %c0_9 = arith.constant 0 : index
    %9 = vector.load %arg5[%c0_8, %c0_9] : memref<64x32xf32, #tpu.memory_space<vmem>>, vector<64x32xf32>
    %cst_10 = arith.constant dense<0.000000e+00> : vector<8x32xf32>
    %10 = tpu.matmul %8, %9, %cst_10 {dimension_numbers = #tpu.dot_dimension_numbers<[1], [0], [0], [1], [0, 0, 1, 1], [], []>} : vector<8x64xf32>, vector<64x32xf32>, vector<8x32xf32> -> vector<8x32xf32>
    %c0_11 = arith.constant 0 : index
    %c0_12 = arith.constant 0 : index
    %11 = vector.load %arg6[%c0_11, %c0_12] : memref<1x32xf32, #tpu.memory_space<vmem>>, vector<1x32xf32>
    %12 = vector.broadcast %11 : vector<1x32xf32> to vector<8x32xf32>
    %13 = arith.addf %10, %12 : vector<8x32xf32>
    %cst_13 = arith.constant 0.000000e+00 : f32
    %14 = vector.broadcast %cst_13 : f32 to vector<8x32xf32>
    %15 = arith.maximumf %13, %14 : vector<8x32xf32>
    %c0_14 = arith.constant 0 : index
    %c0_15 = arith.constant 0 : index
    %16 = vector.load %arg7[%c0_14, %c0_15] : memref<32x256xf32, #tpu.memory_space<vmem>>, vector<32x256xf32>
    %cst_16 = arith.constant dense<0.000000e+00> : vector<8x256xf32>
    %17 = tpu.matmul %15, %16, %cst_16 {dimension_numbers = #tpu.dot_dimension_numbers<[1], [0], [0], [1], [0, 0, 1, 1], [], []>} : vector<8x32xf32>, vector<32x256xf32>, vector<8x256xf32> -> vector<8x256xf32>
    %c0_17 = arith.constant 0 : index
    %c0_18 = arith.constant 0 : index
    %18 = vector.load %arg8[%c0_17, %c0_18] : memref<1x256xf32, #tpu.memory_space<vmem>>, vector<1x256xf32>
    %19 = vector.broadcast %18 : vector<1x256xf32> to vector<8x256xf32>
    %20 = arith.addf %17, %19 : vector<8x256xf32>
    %21 = vector.extract_strided_slice %20 {offsets = [0, 196], sizes = [8, 32], strides = [1, 1]} : vector<8x256xf32> to vector<8x32xf32>
    %22 = vector.extract_strided_slice %21 {offsets = [0, 0], sizes = [8, 16], strides = [1, 1]} : vector<8x32xf32> to vector<8x16xf32>
    %23 = vector.extract_strided_slice %21 {offsets = [0, 16], sizes = [8, 16], strides = [1, 1]} : vector<8x32xf32> to vector<8x16xf32>
    %cst_19 = arith.constant 5.000000e-01 : f32
    %24 = vector.broadcast %cst_19 : f32 to vector<8x16xf32>
    %25 = arith.mulf %24, %23 : vector<8x16xf32>
    %26 = math.exp %25 : vector<8x16xf32>
    %27 = arith.mulf %26, %1 : vector<8x16xf32>
    %28 = arith.addf %22, %27 : vector<8x16xf32>
    %c0_20 = arith.constant 0 : index
    %c0_21 = arith.constant 0 : index
    %29 = vector.load %arg9[%c0_20, %c0_21] : memref<16x32xf32, #tpu.memory_space<vmem>>, vector<16x32xf32>
    %cst_22 = arith.constant dense<0.000000e+00> : vector<8x32xf32>
    %30 = tpu.matmul %28, %29, %cst_22 {dimension_numbers = #tpu.dot_dimension_numbers<[1], [0], [0], [1], [0, 0, 1, 1], [], []>} : vector<8x16xf32>, vector<16x32xf32>, vector<8x32xf32> -> vector<8x32xf32>
    %c0_23 = arith.constant 0 : index
    %c0_24 = arith.constant 0 : index
    %31 = vector.load %arg10[%c0_23, %c0_24] : memref<1x32xf32, #tpu.memory_space<vmem>>, vector<1x32xf32>
    %32 = vector.broadcast %31 : vector<1x32xf32> to vector<8x32xf32>
    %33 = arith.addf %30, %32 : vector<8x32xf32>
    %cst_25 = arith.constant 0.000000e+00 : f32
    %34 = vector.broadcast %cst_25 : f32 to vector<8x32xf32>
    %35 = arith.maximumf %33, %34 : vector<8x32xf32>
    %c0_26 = arith.constant 0 : index
    %c0_27 = arith.constant 0 : index
    %36 = vector.load %arg11[%c0_26, %c0_27] : memref<32x64xf32, #tpu.memory_space<vmem>>, vector<32x64xf32>
    %cst_28 = arith.constant dense<0.000000e+00> : vector<8x64xf32>
    %37 = tpu.matmul %35, %36, %cst_28 {dimension_numbers = #tpu.dot_dimension_numbers<[1], [0], [0], [1], [0, 0, 1, 1], [], []>} : vector<8x32xf32>, vector<32x64xf32>, vector<8x64xf32> -> vector<8x64xf32>
    %c0_29 = arith.constant 0 : index
    %c0_30 = arith.constant 0 : index
    %38 = vector.load %arg12[%c0_29, %c0_30] : memref<1x64xf32, #tpu.memory_space<vmem>>, vector<1x64xf32>
    %39 = vector.broadcast %38 : vector<1x64xf32> to vector<8x64xf32>
    %40 = arith.addf %37, %39 : vector<8x64xf32>
    %cst_31 = arith.constant 0.000000e+00 : f32
    %41 = vector.broadcast %cst_31 : f32 to vector<8x64xf32>
    %42 = arith.maximumf %40, %41 : vector<8x64xf32>
    %c0_32 = arith.constant 0 : index
    %c0_33 = arith.constant 0 : index
    %43 = vector.load %arg13[%c0_32, %c0_33] : memref<64x256xf32, #tpu.memory_space<vmem>>, vector<64x256xf32>
    %cst_34 = arith.constant dense<0.000000e+00> : vector<8x256xf32>
    %44 = tpu.matmul %42, %43, %cst_34 {dimension_numbers = #tpu.dot_dimension_numbers<[1], [0], [0], [1], [0, 0, 1, 1], [], []>} : vector<8x64xf32>, vector<64x256xf32>, vector<8x256xf32> -> vector<8x256xf32>
    %c0_35 = arith.constant 0 : index
    %c0_36 = arith.constant 0 : index
    %45 = vector.load %arg14[%c0_35, %c0_36] : memref<1x256xf32, #tpu.memory_space<vmem>>, vector<1x256xf32>
    %46 = vector.broadcast %45 : vector<1x256xf32> to vector<8x256xf32>
    %47 = arith.addf %44, %46 : vector<8x256xf32>
    %48 = tpu.iota {dimensions = array<i32: 1>} : vector<8x256xi32>
    %c196_i32 = arith.constant 196 : i32
    %49 = vector.broadcast %c196_i32 : i32 to vector<8x256xi32>
    %50 = arith.cmpi slt, %48, %49 : vector<8x256xi32>
    %51 = arith.negf %47 : vector<8x256xf32>
    %52 = math.exp %51 : vector<8x256xf32>
    %cst_37 = arith.constant 1.000000e+00 : f32
    %53 = vector.broadcast %cst_37 : f32 to vector<8x256xf32>
    %54 = arith.addf %53, %52 : vector<8x256xf32>
    %55 = arith.divf %53, %54 : vector<8x256xf32>
    %56 = arith.select %50, %55, %20 : vector<8x256xi1>, vector<8x256xf32>
    %c0_38 = arith.constant 0 : index
    %c0_39 = arith.constant 0 : index
    %57 = vector.load %arg15[%c0_38, %c0_39] : memref<8x256xf32, #tpu.memory_space<vmem>>, vector<8x256xf32>
    tpu.vector_store %arg15[%c0_38, %c0_39], %56 {strides = array<i32>} : memref<8x256xf32, #tpu.memory_space<vmem>>, vector<8x256xf32>,
    return
  }
  func.func @transform_0(%arg0: i32) -> (i32, i32) {
    %c0_i32 = arith.constant 0 : i32
    %c0_i32_0 = arith.constant 0 : i32
    return %arg0, %c0_i32 : i32, i32
  }
  func.func @transform_1(%arg0: i32) -> (i32, i32) {
    %c0_i32 = arith.constant 0 : i32
    %c0_i32_0 = arith.constant 0 : i32
    return %arg0, %c0_i32 : i32, i32
  }
  func.func @transform_2(%arg0: i32) -> (i32, i32) {
    %c0_i32 = arith.constant 0 : i32
    %c0_i32_0 = arith.constant 0 : i32
    %c0_i32_1 = arith.constant 0 : i32
    return %c0_i32, %c0_i32_0 : i32, i32
  }
  func.func @transform_3(%arg0: i32) -> (i32, i32) {
    %c0_i32 = arith.constant 0 : i32
    %c0_i32_0 = arith.constant 0 : i32
    %c0_i32_1 = arith.constant 0 : i32
    return %c0_i32, %c0_i32_0 : i32, i32
  }
  func.func @transform_4(%arg0: i32) -> (i32, i32) {
    %c0_i32 = arith.constant 0 : i32
    %c0_i32_0 = arith.constant 0 : i32
    %c0_i32_1 = arith.constant 0 : i32
    return %c0_i32, %c0_i32_0 : i32, i32
  }
  func.func @transform_5(%arg0: i32) -> (i32, i32) {
    %c0_i32 = arith.constant 0 : i32
    %c0_i32_0 = arith.constant 0 : i32
    %c0_i32_1 = arith.constant 0 : i32
    return %c0_i32, %c0_i32_0 : i32, i32
  }
  func.func @transform_6(%arg0: i32) -> (i32, i32) {
    %c0_i32 = arith.constant 0 : i32
    %c0_i32_0 = arith.constant 0 : i32
    %c0_i32_1 = arith.constant 0 : i32
    return %c0_i32, %c0_i32_0 : i32, i32
  }
  func.func @transform_7(%arg0: i32) -> (i32, i32) {
    %c0_i32 = arith.constant 0 : i32
    %c0_i32_0 = arith.constant 0 : i32
    %c0_i32_1 = arith.constant 0 : i32
    return %c0_i32, %c0_i32_0 : i32, i32
  }
  func.func @transform_8(%arg0: i32) -> (i32, i32) {
    %c0_i32 = arith.constant 0 : i32
    %c0_i32_0 = arith.constant 0 : i32
    %c0_i32_1 = arith.constant 0 : i32
    return %c0_i32, %c0_i32_0 : i32, i32
  }
  func.func @transform_9(%arg0: i32) -> (i32, i32) {
    %c0_i32 = arith.constant 0 : i32
    %c0_i32_0 = arith.constant 0 : i32
    %c0_i32_1 = arith.constant 0 : i32
    return %c0_i32, %c0_i32_0 : i32, i32
  }
  func.func @transform_10(%arg0: i32) -> (i32, i32) {
    %c0_i32 = arith.constant 0 : i32
    %c0_i32_0 = arith.constant 0 : i32
    %c0_i32_1 = arith.constant 0 : i32
    return %c0_i32, %c0_i32_0 : i32, i32
  }
  func.func @transform_11(%arg0: i32) -> (i32, i32) {
    %c0_i32 = arith.constant 0 : i32
    %c0_i32_0 = arith.constant 0 : i32
    %c0_i32_1 = arith.constant 0 : i32
    return %c0_i32, %c0_i32_0 : i32, i32
  }
  func.func @transform_12(%arg0: i32) -> (i32, i32) {
    %c0_i32 = arith.constant 0 : i32
    %c0_i32_0 = arith.constant 0 : i32
    %c0_i32_1 = arith.constant 0 : i32
    return %c0_i32, %c0_i32_0 : i32, i32
  }
  func.func @transform_13(%arg0: i32) -> (i32, i32) {
    %c0_i32 = arith.constant 0 : i32
    %c0_i32_0 = arith.constant 0 : i32
    %c0_i32_1 = arith.constant 0 : i32
    return %c0_i32, %c0_i32_0 : i32, i32
  }
  func.func @transform_14(%arg0: i32) -> (i32, i32) {
    %c0_i32 = arith.constant 0 : i32
    %c0_i32_0 = arith.constant 0 : i32
    return %arg0, %c0_i32 : i32, i32
  }
}

</mosaic_0001>

<llo_original>
// kernel: vae_forward.1
$region0: #{vae_forward.1}
  #allocation0 [shape = 'u32[]', space=smem, size = 0x4, offset = 0x4, fixed_abs, tag = 'smem constant byte address 0x4 - core index']
  #allocation1 [shape = 'u32[72,128]{1,0:T(1,128)}', space=vmem, size = 0x9000, scoped, tag = 'internal scratch']
  %s0 = inlined_call_operand.vmem [shape: f32[8,196], index: 0, kind: input, shape index: {}]
  %s1 = inlined_call_operand.vmem [shape: f32[8,16], index: 1, kind: input, shape index: {}]
  %s2 = inlined_call_operand.vmem [shape: f32[196,64], index: 2, kind: input, shape index: {}]
  %s3 = inlined_call_operand.vmem [shape: f32[1,64], index: 3, kind: input, shape index: {}]
  %s4 = inlined_call_operand.vmem [shape: f32[64,32], index: 4, kind: input, shape index: {}]
  %s5 = inlined_call_operand.vmem [shape: f32[1,32], index: 5, kind: input, shape index: {}]
  %s6 = inlined_call_operand.vmem [shape: f32[32,256], index: 6, kind: input, shape index: {}]
  %s7 = inlined_call_operand.vmem [shape: f32[1,256], index: 7, kind: input, shape index: {}]
  %s8 = inlined_call_operand.vmem [shape: f32[16,32], index: 8, kind: input, shape index: {}]
  %s9 = inlined_call_operand.vmem [shape: f32[1,32], index: 9, kind: input, shape index: {}]
  %s10 = inlined_call_operand.vmem [shape: f32[32,64], index: 10, kind: input, shape index: {}]
  %s11 = inlined_call_operand.vmem [shape: f32[1,64], index: 11, kind: input, shape index: {}]
  %s12 = inlined_call_operand.vmem [shape: f32[64,256], index: 12, kind: input, shape index: {}]
  %s13 = inlined_call_operand.vmem [shape: f32[1,256], index: 13, kind: input, shape index: {}]
  %s14 = inlined_call_operand.vmem [shape: f32[8,256], index: 14, kind: output, shape index: {}]
  %s15 = sld [smem:[#allocation0]]
  $region66: #{vae_forward.1} parent=0
    _
  %s17 = ssub.s32 1, %s15
  %s18 = scalar_select 0, %s17, %s15
  // Predicated region
  $region2: #{vae_forward.1} parent=0 // pred_check
    _
  $region3: #{vae_forward.1} parent=0 // pred_check_branch
    %20 = sbr.rel (0) target = $region5
  $region4: #{vae_forward.1} parent=0 // pred_region
    _
  $region5: #{vae_forward.1} parent=0 // pred_fallthru
    _
  // Predicated region
  $region6: #{vae_forward.1} parent=0 // pred_check
    _
  $region7: #{vae_forward.1} parent=0 // pred_check_branch
    %22 = sbr.rel (0) target = $region9
  $region8: #{vae_forward.1} parent=0 // pred_region
    _
  $region9: #{vae_forward.1} parent=0 // pred_fallthru
    _
  // Predicated region
  $region10: #{vae_forward.1} parent=0 // pred_check
    _
  $region11: #{vae_forward.1} parent=0 // pred_check_branch
    %24 = sbr.rel (0) target = $region13
  $region12: #{vae_forward.1} parent=0 // pred_region
    _
  $region13: #{vae_forward.1} parent=0 // pred_fallthru
    _
  // Predicated region
  $region14: #{vae_forward.1} parent=0 // pred_check
    _
  $region15: #{vae_forward.1} parent=0 // pred_check_branch
    %26 = sbr.rel (0) target = $region17
  $region16: #{vae_forward.1} parent=0 // pred_region
    _
  $region17: #{vae_forward.1} parent=0 // pred_fallthru
    _
  // Predicated region
  $region18: #{vae_forward.1} parent=0 // pred_check
    _
  $region19: #{vae_forward.1} parent=0 // pred_check_branch
    %28 = sbr.rel (0) target = $region21
  $region20: #{vae_forward.1} parent=0 // pred_region
    _
  $region21: #{vae_forward.1} parent=0 // pred_fallthru
    _
  // Predicated region
  $region22: #{vae_forward.1} parent=0 // pred_check
    _
  $region23: #{vae_forward.1} parent=0 // pred_check_branch
    %30 = sbr.rel (0) target = $region25
  $region24: #{vae_forward.1} parent=0 // pred_region
    _
  $region25: #{vae_forward.1} parent=0 // pred_fallthru
    _
  // Predicated region
  $region26: #{vae_forward.1} parent=0 // pred_check
    _
  $region27: #{vae_forward.1} parent=0 // pred_check_branch
    %32 = sbr.rel (0) target = $region29
  $region28: #{vae_forward.1} parent=0 // pred_region
    _
  $region29: #{vae_forward.1} parent=0 // pred_fallthru
    _
  // Predicated region
  $region30: #{vae_forward.1} parent=0 // pred_check
    _
  $region31: #{vae_forward.1} parent=0 // pred_check_branch
    %34 = sbr.rel (0) target = $region33
  $region32: #{vae_forward.1} parent=0 // pred_region
    _
  $region33: #{vae_forward.1} parent=0 // pred_fallthru
    _
  // Predicated region
  $region34: #{vae_forward.1} parent=0 // pred_check
    _
  $region35: #{vae_forward.1} parent=0 // pred_check_branch
    %36 = sbr.rel (0) target = $region37
  $region36: #{vae_forward.1} parent=0 // pred_region
    _
  $region37: #{vae_forward.1} parent=0 // pred_fallthru
    _
  // Predicated region
  $region38: #{vae_forward.1} parent=0 // pred_check
    _
  $region39: #{vae_forward.1} parent=0 // pred_check_branch
    %38 = sbr.rel (0) target = $region41
  $region40: #{vae_forward.1} parent=0 // pred_region
    _
  $region41: #{vae_forward.1} parent=0 // pred_fallthru
    _
  // Predicated region
  $region42: #{vae_forward.1} parent=0 // pred_check
    _
  $region43: #{vae_forward.1} parent=0 // pred_check_branch
    %40 = sbr.rel (0) target = $region45
  $region44: #{vae_forward.1} parent=0 // pred_region
    _
  $region45: #{vae_forward.1} parent=0 // pred_fallthru
    _
  // Predicated region
  $region46: #{vae_forward.1} parent=0 // pred_check
    _
  $region47: #{vae_forward.1} parent=0 // pred_check_branch
    %42 = sbr.rel (0) target = $region49
  $region48: #{vae_forward.1} parent=0 // pred_region
    _
  $region49: #{vae_forward.1} parent=0 // pred_fallthru
    _
  // Predicated region
  $region50: #{vae_forward.1} parent=0 // pred_check
    _
  $region51: #{vae_forward.1} parent=0 // pred_check_branch
    %44 = sbr.rel (0) target = $region53
  $region52: #{vae_forward.1} parent=0 // pred_region
    _
  $region53: #{vae_forward.1} parent=0 // pred_fallthru
    _
  // Predicated region
  $region54: #{vae_forward.1} parent=0 // pred_check
    _
  $region55: #{vae_forward.1} parent=0 // pred_check_branch
    %46 = sbr.rel (0) target = $region57
  $region56: #{vae_forward.1} parent=0 // pred_region
    _
  $region57: #{vae_forward.1} parent=0 // pred_fallthru
    _
  %v47 = vld [vmem:[%s0] sm:$0xff]
  %v48 = vld [vmem:[%s0 + $0x8] sm:$0xff]
  %v49 = vld [vmem:[%s1] sm:$0xff]
  %v50 = vld [vmem:[%s2] sm:$0xff]
  %v51 = vld [vmem:[%s2 + $0x8] sm:$0xff]
  %v52 = vld [vmem:[%s2 + $0x10] sm:$0xff]
  %v53 = vld [vmem:[%s2 + $0x18] sm:$0xff]
  %v54 = vld [vmem:[%s2 + $0x20] sm:$0xff]
  %v55 = vld [vmem:[%s2 + $0x28] sm:$0xff]
  %v56 = vld [vmem:[%s2 + $0x30] sm:$0xff]
  %v57 = vld [vmem:[%s2 + $0x38] sm:$0xff]
  %v58 = vld [vmem:[%s2 + $0x40] sm:$0xff]
  %v59 = vld [vmem:[%s2 + $0x48] sm:$0xff]
  %v60 = vld [vmem:[%s2 + $0x50] sm:$0xff]
  %v61 = vld [vmem:[%s2 + $0x58] sm:$0xff]
  %v62 = vld [vmem:[%s2 + $0x60] sm:$0xff]
  %v63 = vld [vmem:[%s2 + $0x68] sm:$0xff]
  %v64 = vld [vmem:[%s2 + $0x70] sm:$0xff]
  %v65 = vld [vmem:[%s2 + $0x78] sm:$0xff]
  %v66 = vld [vmem:[%s2 + $0x80] sm:$0xff]
  %v67 = vld [vmem:[%s2 + $0x88] sm:$0xff]
  %v68 = vld [vmem:[%s2 + $0x90] sm:$0xff]
  %v69 = vld [vmem:[%s2 + $0x98] sm:$0xff]
  %v70 = vld [vmem:[%s2 + $0xa0] sm:$0xff]
  %v71 = vld [vmem:[%s2 + $0xa8] sm:$0xff]
  %v72 = vld [vmem:[%s2 + $0xb0] sm:$0xff]
  %v73 = vld [vmem:[%s2 + $0xb8] sm:$0xff]
  %v74 = vld [vmem:[%s2 + $0xc0] sm:$0xf]
  %v75 = vld [vmem:[%s3] sm:$0x1]
  %v77 = vperm.slane %v75, 0
  %vm79 = vcmask 556032
  %v81 = vsel %vm79, %v48, 0
  %vm83 = vcmask 1043456
  %v85 = vsel %vm83, %v74, 0
  %87 = vmatpush.msra.mxu0 %v65
  %88 = vmatpush.msra.mxu0 %v64
  %89 = vmatpush.msra.mxu0 %v63
  %90 = vmatpush.msra.mxu0 %v62
  %91 = vmatpush.msra.mxu0 %v61
  %92 = vmatpush.msra.mxu0 %v60
  %93 = vmatpush.msra.mxu0 %v59
  %94 = vmatpush.msra.mxu0 %v58
  %95 = vmatpush.msra.mxu0 %v57
  %96 = vmatpush.msra.mxu0 %v56
  %97 = vmatpush.msra.mxu0 %v55
  %98 = vmatpush.msra.mxu0 %v54
  %99 = vmatpush.msra.mxu0 %v53
  %100 = vmatpush.msra.mxu0 %v52
  %101 = vmatpush.msra.mxu0 %v51
  %102 = vmatpush.msra.mxu0 %v50
  %103 = vmatmul.f32.gmra.mxu0 %v47
  %v104 = vpop.f32.mrf.mxu0
  %v105 = vadd.f32 %v77, %v104
  %106 = vdwg.mxu0
  %107 = vmatpush.msra.mxu0 0.0
  %108 = vmatpush.msra.mxu0 0.0
  %109 = vmatpush.msra.mxu0 0.0
  %110 = vmatpush.msra.mxu0 0.0
  %111 = vmatpush.msra.mxu0 0.0
  %112 = vmatpush.msra.mxu0 0.0
  %113 = vmatpush.msra.mxu0 0.0
  %114 = vmatpush.msra.mxu0 %v85
  %115 = vmatpush.msra.mxu0 %v73
  %116 = vmatpush.msra.mxu0 %v72
  %117 = vmatpush.msra.mxu0 %v71
  %118 = vmatpush.msra.mxu0 %v70
  %119 = vmatpush.msra.mxu0 %v69
  %120 = vmatpush.msra.mxu0 %v68
  %121 = vmatpush.msra.mxu0 %v67
  %122 = vmatpush.msra.mxu0 %v66
  %123 = vmatmul.f32.gmra.mxu0 %v81
  %v124 = vpop.f32.mrf.mxu0
  %v125 = vadd.f32 %v105, %v124
  %126 = vdwg.mxu0
  %v127 = vmax.f32 %v125, 0.0
  %v128 = vld [vmem:[%s4] sm:$0xff]
  %v129 = vld [vmem:[%s4 + $0x8] sm:$0xff]
  %v130 = vld [vmem:[%s4 + $0x10] sm:$0xff]
  %v131 = vld [vmem:[%s4 + $0x18] sm:$0xff]
  %v132 = vld [vmem:[%s4 + $0x20] sm:$0xff]
  %v133 = vld [vmem:[%s4 + $0x28] sm:$0xff]
  %v134 = vld [vmem:[%s4 + $0x30] sm:$0xff]
  %v135 = vld [vmem:[%s4 + $0x38] sm:$0xff]
  %v136 = vld [vmem:[%s5] sm:$0x1]
  %v138 = vperm.slane %v136, 0
  %vm140 = vcmask 523264
  %v142 = vsel %vm140, %v127, 0
  %144 = vmatpush.msra.mxu0 0.0
  %145 = vmatpush.msra.mxu0 0.0
  %146 = vmatpush.msra.mxu0 0.0
  %147 = vmatpush.msra.mxu0 0.0
  %148 = vmatpush.msra.mxu0 0.0
  %149 = vmatpush.msra.mxu0 0.0
  %150 = vmatpush.msra.mxu0 0.0
  %151 = vmatpush.msra.mxu0 0.0
  %152 = vmatpush.msra.mxu0 %v135
  %153 = vmatpush.msra.mxu0 %v134
  %154 = vmatpush.msra.mxu0 %v133
  %155 = vmatpush.msra.mxu0 %v132
  %156 = vmatpush.msra.mxu0 %v131
  %157 = vmatpush.msra.mxu0 %v130
  %158 = vmatpush.msra.mxu0 %v129
  %159 = vmatpush.msra.mxu0 %v128
  %160 = vmatmul.f32.gmra.mxu0 %v142
  %v161 = vpop.f32.mrf.mxu0
  %v162 = vadd.f32 %v138, %v161
  %163 = vdwg.mxu0
  %v164 = vmax.f32 %v162, 0.0
  %v165 = vld [vmem:[%s6] sm:$0xff]
  %v166 = vld [vmem:[%s6 + $0x8] sm:$0xff]
  %v167 = vld [vmem:[%s6 + $0x10] sm:$0xff]
  %v168 = vld [vmem:[%s6 + $0x18] sm:$0xff]
  %v169 = vld [vmem:[%s6 + $0x20] sm:$0xff]
  %v170 = vld [vmem:[%s6 + $0x28] sm:$0xff]
  %v171 = vld [vmem:[%s6 + $0x30] sm:$0xff]
  %v172 = vld [vmem:[%s6 + $0x38] sm:$0xff]
  %v173 = vld [vmem:[%s7] sm:$0x3]
  %v175 = vperm.slane %v173, 0
  %v176 = vperm.slane %v173, 1
  %vm179 = vcmask 261120
  %v181 = vsel %vm179, %v164, 0
  %183 = vmatpush.msra.mxu0 0.0
  %184 = vmatpush.msra.mxu0 0.0
  %185 = vmatpush.msra.mxu0 0.0
  %186 = vmatpush.msra.mxu0 0.0
  %187 = vmatpush.msra.mxu0 0.0
  %188 = vmatpush.msra.mxu0 0.0
  %189 = vmatpush.msra.mxu0 0.0
  %190 = vmatpush.msra.mxu0 0.0
  %191 = vmatpush.msra.mxu0 0.0
  %192 = vmatpush.msra.mxu0 0.0
  %193 = vmatpush.msra.mxu0 0.0
  %194 = vmatpush.msra.mxu0 0.0
  %195 = vmatpush.msra.mxu0 %v171
  %196 = vmatpush.msra.mxu0 %v169
  %197 = vmatpush.msra.mxu0 %v167
  %198 = vmatpush.msra.mxu0 %v165
  %199 = vmatmul.f32.gmra.mxu0 %v181
  %v200 = vpop.f32.mrf.mxu0
  %v201 = vadd.f32 %v175, %v200
  %202 = vdwg.mxu0
  %203 = vmatpush.msra.mxu0 0.0
  %204 = vmatpush.msra.mxu0 0.0
  %205 = vmatpush.msra.mxu0 0.0
  %206 = vmatpush.msra.mxu0 0.0
  %207 = vmatpush.msra.mxu0 0.0
  %208 = vmatpush.msra.mxu0 0.0
  %209 = vmatpush.msra.mxu0 0.0
  %210 = vmatpush.msra.mxu0 0.0
  %211 = vmatpush.msra.mxu0 0.0
  %212 = vmatpush.msra.mxu0 0.0
  %213 = vmatpush.msra.mxu0 0.0
  %214 = vmatpush.msra.mxu0 0.0
  %215 = vmatpush.msra.mxu0 %v172
  %216 = vmatpush.msra.mxu0 %v170
  %217 = vmatpush.msra.mxu0 %v168
  %218 = vmatpush.msra.mxu0 %v166
  %219 = vmatmul.f32.gmra.mxu0 %v181
  %v220 = vpop.f32.mrf.mxu0
  %v221 = vadd.f32 %v176, %v220
  %222 = vdwg.mxu0
  %v223 = vmul.f32 %v221, 0.5
  %v224 = vmul.f32 %v223, 1.442695
  %v225 = vpow.pop %v224
  %227 = vrot.lane.b32.xlu0 %v49, 84
  %v228 = vpop.permute.xlu0 %227
  %v230 = vmul.f32 %v225, %v228
  %232 = vrot.lane.b32.xlu0 %v230, 112
  %v233 = vpop.permute.xlu0 %232
  %v235 = vadd.f32 %v221, %v233
  %v236 = vld [vmem:[%s8] sm:$0xff]
  %v237 = vld [vmem:[%s8 + $0x8] sm:$0xff]
  %v238 = vld [vmem:[%s9] sm:$0x1]
  %v240 = vperm.slane %v238, 0
  %243 = vrot.lane.b32.xlu0 %v235, 60
  %v244 = vpop.permute.xlu0 %243
  %vm245 = vcmask 130048
  %v246 = vsel %vm245, %v244, 0
  %248 = vmatpush.msra.mxu0 0.0
  %249 = vmatpush.msra.mxu0 0.0
  %250 = vmatpush.msra.mxu0 0.0
  %251 = vmatpush.msra.mxu0 0.0
  %252 = vmatpush.msra.mxu0 0.0
  %253 = vmatpush.msra.mxu0 0.0
  %254 = vmatpush.msra.mxu0 0.0
  %255 = vmatpush.msra.mxu0 0.0
  %256 = vmatpush.msra.mxu0 0.0
  %257 = vmatpush.msra.mxu0 0.0
  %258 = vmatpush.msra.mxu0 0.0
  %259 = vmatpush.msra.mxu0 0.0
  %260 = vmatpush.msra.mxu0 0.0
  %261 = vmatpush.msra.mxu0 0.0
  %262 = vmatpush.msra.mxu0 %v237
  %263 = vmatpush.msra.mxu0 %v236
  %264 = vmatmul.f32.gmra.mxu0 %v246
  %v265 = vpop.f32.mrf.mxu0
  %v266 = vadd.f32 %v240, %v265
  %267 = vdwg.mxu0
  %v268 = vmax.f32 %v266, 0.0
  %v269 = vld [vmem:[%s10] sm:$0xff]
  %v270 = vld [vmem:[%s10 + $0x8] sm:$0xff]
  %v271 = vld [vmem:[%s10 + $0x10] sm:$0xff]
  %v272 = vld [vmem:[%s10 + $0x18] sm:$0xff]
  %v273 = vld [vmem:[%s11] sm:$0x1]
  %v275 = vperm.slane %v273, 0
  %v278 = vsel %vm179, %v268, 0
  %280 = vmatpush.msra.mxu0 0.0
  %281 = vmatpush.msra.mxu0 0.0
  %282 = vmatpush.msra.mxu0 0.0
  %283 = vmatpush.msra.mxu0 0.0
  %284 = vmatpush.msra.mxu0 0.0
  %285 = vmatpush.msra.mxu0 0.0
  %286 = vmatpush.msra.mxu0 0.0
  %287 = vmatpush.msra.mxu0 0.0
  %288 = vmatpush.msra.mxu0 0.0
  %289 = vmatpush.msra.mxu0 0.0
  %290 = vmatpush.msra.mxu0 0.0
  %291 = vmatpush.msra.mxu0 0.0
  %292 = vmatpush.msra.mxu0 %v272
  %293 = vmatpush.msra.mxu0 %v271
  %294 = vmatpush.msra.mxu0 %v270
  %295 = vmatpush.msra.mxu0 %v269
  %296 = vmatmul.f32.gmra.mxu0 %v278
  %v297 = vpop.f32.mrf.mxu0
  %v298 = vadd.f32 %v275, %v297
  %299 = vdwg.mxu0
  %v300 = vmax.f32 %v298, 0.0
  %v301 = vld [vmem:[%s12] sm:$0xff]
  %v302 = vld [vmem:[%s12 + $0x8] sm:$0xff]
  %v303 = vld [vmem:[%s12 + $0x10] sm:$0xff]
  %v304 = vld [vmem:[%s12 + $0x18] sm:$0xff]
  %v305 = vld [vmem:[%s12 + $0x20] sm:$0xff]
  %v306 = vld [vmem:[%s12 + $0x28] sm:$0xff]
  %v307 = vld [vmem:[%s12 + $0x30] sm:$0xff]
  %v308 = vld [vmem:[%s12 + $0x38] sm:$0xff]
  %v309 = vld [vmem:[%s12 + $0x40] sm:$0xff]
  %v310 = vld [vmem:[%s12 + $0x48] sm:$0xff]
  %v311 = vld [vmem:[%s12 + $0x50] sm:$0xff]
  %v312 = vld [vmem:[%s12 + $0x58] sm:$0xff]
  %v313 = vld [vmem:[%s12 + $0x60] sm:$0xff]
  %v314 = vld [vmem:[%s12 + $0x68] sm:$0xff]
  %v315 = vld [vmem:[%s12 + $0x70] sm:$0xff]
  %v316 = vld [vmem:[%s12 + $0x78] sm:$0xff]
  %v317 = vld [vmem:[%s13] sm:$0x3]
  %v319 = vperm.slane %v317, 0
  %v320 = vperm.slane %v317, 1
  %v324 = vsel %vm140, %v300, 0
  %326 = vmatpush.msra.mxu0 0.0
  %327 = vmatpush.msra.mxu0 0.0
  %328 = vmatpush.msra.mxu0 0.0
  %329 = vmatpush.msra.mxu0 0.0
  %330 = vmatpush.msra.mxu0 0.0
  %331 = vmatpush.msra.mxu0 0.0
  %332 = vmatpush.msra.mxu0 0.0
  %333 = vmatpush.msra.mxu0 0.0
  %334 = vmatpush.msra.mxu0 %v315
  %335 = vmatpush.msra.mxu0 %v313
  %336 = vmatpush.msra.mxu0 %v311
  %337 = vmatpush.msra.mxu0 %v309
  %338 = vmatpush.msra.mxu0 %v307
  %339 = vmatpush.msra.mxu0 %v305
  %340 = vmatpush.msra.mxu0 %v303
  %341 = vmatpush.msra.mxu0 %v301
  %342 = vmatmul.f32.gmra.mxu0 %v324
  %v343 = vpop.f32.mrf.mxu0
  %v344 = vadd.f32 %v319, %v343
  %345 = vdwg.mxu0
  %346 = vmatpush.msra.mxu0 0.0
  %347 = vmatpush.msra.mxu0 0.0
  %348 = vmatpush.msra.mxu0 0.0
  %349 = vmatpush.msra.mxu0 0.0
  %350 = vmatpush.msra.mxu0 0.0
  %351 = vmatpush.msra.mxu0 0.0
  %352 = vmatpush.msra.mxu0 0.0
  %353 = vmatpush.msra.mxu0 0.0
  %354 = vmatpush.msra.mxu0 %v316
  %355 = vmatpush.msra.mxu0 %v314
  %356 = vmatpush.msra.mxu0 %v312
  %357 = vmatpush.msra.mxu0 %v310
  %358 = vmatpush.msra.mxu0 %v308
  %359 = vmatpush.msra.mxu0 %v306
  %360 = vmatpush.msra.mxu0 %v304
  %361 = vmatpush.msra.mxu0 %v302
  %362 = vmatmul.f32.gmra.mxu0 %v324
  %v363 = vpop.f32.mrf.mxu0
  %v364 = vadd.f32 %v320, %v363
  %365 = vdwg.mxu0
  %v366 = vlaneseq
  %v367 = vand.u32 %v366, 127
  %v368 = vadd.s32 %v367, 128
  %vm369 = vcmp.lt.s32.totalorder %v367, 196
  %vm370 = vcmp.lt.s32.totalorder %v368, 196
  %v371 = vxor.u32 %v344, 2147483648
  %v372 = vxor.u32 %v364, 2147483648
  %v373 = vmul.f32 %v371, 1.442695
  %v374 = vpow.pop %v373
  %v375 = vmul.f32 %v372, 1.442695
  %v376 = vpow.pop %v375
  %v377 = vadd.f32 %v374, 1.0
  %v378 = vadd.f32 %v376, 1.0
  %v379 = vrcp.pop %v377
  %v380 = vmul.f32 %v377, %v379
  %v381 = vsub.f32 1.0, %v380
  %v382 = vmul.f32 %v379, %v381
  %v383 = vadd.f32 %v379, %v382
  %vm384 = vweird.f32 %v377
  %vm385 = vweird.f32 %v379
  %vm386 = vmor %vm384, %vm385
  %v387 = vsel %vm386, %v379, %v383
  %v388 = vand.u32 2147483647, %v377
  %vm389 = vcmp.eq.f32.partialorder %v388, 8.507059e+37
  %v390 = vand.u32 %v377, 2147483648
  %v391 = vor.u32 1.1754944e-38, %v390
  %v392 = vsel %vm389, %v391, %v387
  %v393 = vmul.f32 1.0, %v392
  %v394 = vrcp.pop %v378
  %v395 = vmul.f32 %v378, %v394
  %v396 = vsub.f32 1.0, %v395
  %v397 = vmul.f32 %v394, %v396
  %v398 = vadd.f32 %v394, %v397
  %vm399 = vweird.f32 %v378
  %vm400 = vweird.f32 %v394
  %vm401 = vmor %vm399, %vm400
  %v402 = vsel %vm401, %v394, %v398
  %v403 = vand.u32 2147483647, %v378
  %vm404 = vcmp.eq.f32.partialorder %v403, 8.507059e+37
  %v405 = vand.u32 %v378, 2147483648
  %v406 = vor.u32 1.1754944e-38, %v405
  %v407 = vsel %vm404, %v406, %v402
  %v408 = vmul.f32 1.0, %v407
  %v409 = vsel %vm369, %v393, %v201
  %v410 = vsel %vm370, %v408, %v221
  %411 = vst [vmem:[%s14] sm:$0xff] %v409
  %412 = vst [vmem:[%s14 + $0x8] sm:$0xff] %v410
  // Predicated region
  $region58: #{vae_forward.1} parent=0 // pred_check
    _
  $region59: #{vae_forward.1} parent=0 // pred_check_branch
    %414 = sbr.rel (0) target = $region61
  $region60: #{vae_forward.1} parent=0 // pred_region
    _
  $region61: #{vae_forward.1} parent=0 // pred_fallthru
    _
  // Predicated region
  $region62: #{vae_forward.1} parent=0 // pred_check
    _
  $region63: #{vae_forward.1} parent=0 // pred_check_branch
    %416 = sbr.rel (0) target = $region65
  $region64: #{vae_forward.1} parent=0 // pred_region
    _
  $region65: #{vae_forward.1} parent=0 // pred_fallthru
    _

</llo_original>
